<compile_context>
chip_gen: v5e
topology: v5e:2x2
jax: 0.10.0
libtpu: 0.0.40
codegen_flags: <defaults>
</compile_context>

<pallas_src>
import jax
import jax.numpy as jnp
from jax.experimental import pallas as pl
from jax.experimental.pallas import tpu as pltpu


def _logreg_kernel(x_ref, w_ref, b_ref, o_ref):
    # x_ref: (TILE_N, F) VMEM, w_ref: (1, F) VMEM (lane-dense),
    # b_ref: (1,) SMEM scalar, o_ref: (TILE_N, 1) VMEM.
    x = x_ref[...]
    w = w_ref[...]                                   # broadcast over batch rows
    # VPU elementwise multiply + XLU lane reduction (no MXU involvement).
    z = jnp.sum(x * w, axis=-1, keepdims=True) + b_ref[0]
    # sigmoid = 1 / (1 + exp(-z)); exp and approx-reciprocal both run on the EUP.
    o_ref[...] = pl.reciprocal(1.0 + jnp.exp(-z), approx=True).astype(o_ref.dtype)


def _pick_tile_n(n, f, vmem_budget_bytes=8 * 1024 * 1024):
    """Largest row tile whose double-buffered x block fits a conservative VMEM budget."""
    bytes_per_row = f * 4                            # float32 input
    max_rows = max(8, vmem_budget_bytes // (2 * bytes_per_row))
    tile_n = min(n, 1024, max_rows)
    if tile_n < n:                                   # keep sublane dim a multiple of 8
        tile_n = max(8, (tile_n // 8) * 8)
    return tile_n


def logistic_regression_forward(x, weight, bias, *, tile_n=None):
    """x: (N, F) f32, weight: (1, F) f32 (nn.Linear layout), bias: (1,) f32 -> (N, 1) f32."""
    n, f = x.shape
    w_row = weight.reshape(1, f).astype(jnp.float32)     # keep lane-dense (1, F)
    b = bias.reshape(1).astype(jnp.float32)              # scalar, lives in SMEM

    if tile_n is None:
        tile_n = _pick_tile_n(n, f)
    num_tiles = pl.cdiv(n, tile_n)

    return pl.pallas_call(
        _logreg_kernel,
        out_shape=jax.ShapeDtypeStruct((n, 1), jnp.float32),
        grid=(num_tiles,),
        in_specs=[
            pl.BlockSpec((tile_n, f), lambda i: (i, 0)),          # x tiles (pipelined)
            pl.BlockSpec((1, f), lambda i: (0, 0)),               # weight, resident
            pl.BlockSpec(memory_space=pltpu.MemorySpace.SMEM),    # bias scalar
        ],
        out_specs=pl.BlockSpec((tile_n, 1), lambda i: (i, 0)),
        compiler_params=pltpu.CompilerParams(
            dimension_semantics=("parallel",),        # lets v7x shard tiles across 2 TCs
        ),
    )(x, w_row, b)


if __name__ == "__main__":
    key = jax.random.PRNGKey(0)
    kx, kw, kb, kx2 = jax.random.split(key, 4)

    # --- Module-sized check: batch=8, n_input_features=32 --------------------
    n_batch, n_features = 8, 32
    x = jax.random.normal(kx, (n_batch, n_features), dtype=jnp.float32)
    bound = 1.0 / jnp.sqrt(n_features)
    weight = jax.random.uniform(kw, (1, n_features), jnp.float32, -bound, bound)
    bias = jax.random.uniform(kb, (1,), jnp.float32, -bound, bound)

    y = logistic_regression_forward(x, weight, bias)
    jax.block_until_ready(y)
    y_ref = jax.nn.sigmoid(x @ weight.T + bias)
    assert y.shape == (n_batch, 1)
    # EUP approximate reciprocal has ~1e-4 relative error; tolerance set accordingly.
    assert jnp.allclose(y, y_ref, atol=2e-3, rtol=2e-3)

    # --- Larger shape that exercises the tiled, double-buffered grid ---------
    n2, f2 = 1024, 384
    x2 = jax.random.normal(kx2, (n2, f2), dtype=jnp.float32)
    bound2 = 1.0 / jnp.sqrt(f2)
    w2 = jax.random.uniform(kw, (1, f2), jnp.float32, -bound2, bound2)
    bias2 = jax.random.uniform(kb, (1,), jnp.float32, -bound2, bound2)

    y2 = logistic_regression_forward(x2, w2, bias2, tile_n=256)   # grid=(4,)
    jax.block_until_ready(y2)
    y2_ref = jax.nn.sigmoid(x2 @ w2.T + bias2)
    assert y2.shape == (n2, 1)
    assert jnp.allclose(y2, y2_ref, atol=2e-3, rtol=2e-3)

    print("KERNEL_OK")
</pallas_src>

<mosaic_0001>
module attributes {stable_mosaic.version = 11 : i64} {
  func.func @_logreg_kernel(%arg0: i32, %arg1: memref<8x32xf32, #tpu.memory_space<vmem>>, %arg2: memref<1x32xf32, #tpu.memory_space<vmem>>, %arg3: memref<1xf32, #tpu.memory_space<smem>>, %arg4: memref<8x1xf32, #tpu.memory_space<vmem>>) attributes {dimension_semantics = [#tpu.dimension_semantics<parallel>], iteration_bounds = array<i64: 1>, scalar_prefetch = 0 : i64, scratch_operands = 0 : i64, tpu.core_type = #tpu.core_type<tc>, window_params = [{transform_indices = @transform_0, window_bounds = array<i64: 8, 32>}, {pipeline_mode = #tpu.pipeline_mode<synchronous>, transform_indices = @transform_1, window_bounds = array<i64: 1, 32>}, {transform_indices = @transform_2, window_bounds = array<i64: 1>}, {transform_indices = @transform_3, window_bounds = array<i64: 8, 1>}]} {
    %c0 = arith.constant 0 : index
    %c0_0 = arith.constant 0 : index
    %0 = vector.load %arg1[%c0, %c0_0] : memref<8x32xf32, #tpu.memory_space<vmem>>, vector<8x32xf32>
    %c0_1 = arith.constant 0 : index
    %c0_2 = arith.constant 0 : index
    %1 = vector.load %arg2[%c0_1, %c0_2] : memref<1x32xf32, #tpu.memory_space<vmem>>, vector<1x32xf32>
    %2 = vector.broadcast %1 : vector<1x32xf32> to vector<8x32xf32>
    %3 = arith.mulf %0, %2 : vector<8x32xf32>
    %cst = arith.constant dense<0.000000e+00> : vector<8xf32>
    %4 = vector.multi_reduction <add>, %3, %cst [1] : vector<8x32xf32> to vector<8xf32>
    %5 = vector.shape_cast %4 : vector<8xf32> to vector<8x1xf32>
    %c0_3 = arith.constant 0 : index
    %6 = memref.load %arg3[%c0_3] : memref<1xf32, #tpu.memory_space<smem>>
    %7 = vector.broadcast %6 : f32 to vector<8x1xf32>
    %8 = arith.addf %5, %7 : vector<8x1xf32>
    %cst_4 = arith.constant 0.000000e+00 : f32
    %9 = vector.broadcast %cst_4 : f32 to vector<8x1xf32>
    %10 = arith.subf %9, %8 : vector<8x1xf32>
    %11 = math.exp %10 : vector<8x1xf32>
    %cst_5 = arith.constant 1.000000e+00 : f32
    %12 = vector.broadcast %cst_5 : f32 to vector<8x1xf32>
    %13 = arith.addf %12, %11 : vector<8x1xf32>
    %14 = tpu.reciprocal %13 {approx = true} : vector<8x1xf32> -> vector<8x1xf32>
    %c0_6 = arith.constant 0 : index
    %c0_7 = arith.constant 0 : index
    %15 = vector.load %arg4[%c0_6, %c0_7] : memref<8x1xf32, #tpu.memory_space<vmem>>, vector<8x1xf32>
    tpu.vector_store %arg4[%c0_6, %c0_7], %14 {strides = array<i32>} : memref<8x1xf32, #tpu.memory_space<vmem>>, vector<8x1xf32>,
    return
  }
  func.func @transform_0(%arg0: i32) -> (i32, i32) {
    %c0_i32 = arith.constant 0 : i32
    %c0_i32_0 = arith.constant 0 : i32
    return %arg0, %c0_i32 : i32, i32
  }
  func.func @transform_1(%arg0: i32) -> (i32, i32) {
    %c0_i32 = arith.constant 0 : i32
    %c0_i32_0 = arith.constant 0 : i32
    %c0_i32_1 = arith.constant 0 : i32
    return %c0_i32, %c0_i32_0 : i32, i32
  }
  func.func @transform_2(%arg0: i32) -> i32 {
    %c0_i32 = arith.constant 0 : i32
    %c0_i32_0 = arith.constant 0 : i32
    return %c0_i32 : i32
  }
  func.func @transform_3(%arg0: i32) -> (i32, i32) {
    %c0_i32 = arith.constant 0 : i32
    %c0_i32_0 = arith.constant 0 : i32
    return %arg0, %c0_i32 : i32, i32
  }
}

</mosaic_0001>

<llo_original>
// kernel: tpu_custom_call.1
$region0: #{tpu_custom_call.1}
  #allocation0 [shape = 'u32[]', space=smem, size = 0x4, offset = 0x4, fixed_abs, tag = 'smem constant byte address 0x4 - core index']
  #allocation1 [shape = 'u32[72,128]{1,0:T(1,128)}', space=vmem, size = 0x9000, scoped, tag = 'internal scratch']
  #allocation2 [shape = 'f32[1]{0:T(128)S(6)}', space=smem, size = 0x200, scoped, tag = 'scoped memory for tpu_custom_call.1']
  %s0 = inlined_call_operand.hbm [shape: f32[8,32], index: 0, kind: input, shape index: {}]
  %s1 = inlined_call_operand.vmem [shape: f32[1,32], index: 1, kind: input, shape index: {}]
  %s2 = inlined_call_operand.<no memory space> [shape: f32[1], index: 2, kind: input, shape index: {}]
  %s3 = inlined_call_operand.vmem [shape: f32[8,1], index: 3, kind: output, shape index: {}]
  %s4 = sld [smem:[#allocation0]]
  $region26: #{tpu_custom_call.1} parent=0
    _
  %s6 = ssub.s32 1, %s4
  %s7 = scalar_select 0, %s6, %s4
  %8 = sst [smem:[#allocation2]] %s2
  $region1: #{tpu_custom_call.1} parent=0
    #allocation3 [shape = 'u8[4096]{0}', space=vmem, size = 0x1000, scoped, tag = 'input window, operand 0, single buffered']
    #allocation4 [shape = 's32[1]{0}', space=sflag, size = 0x4, scoped, tag = 'scoped memory for tpu_custom_call.1']
    %9 = vsyncpa [#allocation4], 0
    // Predicated region
    $region2: #{tpu_custom_call.1} parent=1 // pred_check
      _
    $region3: #{tpu_custom_call.1} parent=1 // pred_check_branch
      %11 = sbr.rel (0) target = $region5
    $region4: #{tpu_custom_call.1} parent=1 // pred_region
      %13 = vsyncadd [#allocation4], 0
      %s15 = sshll.u32 %s0, 4
      %s16 = int_to_ptr.hbm [resolvable:$true] %s15
      %s17 = sshll.u32 [#allocation3], 4
      %s18 = int_to_ptr.vmem [resolvable:$true] %s17
      %20 = dma.hbm_to_vmem [thread:$0]  %s16, 128, %s18, [#allocation4]
    $region5: #{tpu_custom_call.1} parent=1 // pred_fallthru
      _
    // Predicated region
    $region6: #{tpu_custom_call.1} parent=1 // pred_check
      _
    $region7: #{tpu_custom_call.1} parent=1 // pred_check_branch
      %22 = sbr.rel (0) target = $region9
    $region8: #{tpu_custom_call.1} parent=1 // pred_region
      _
    $region9: #{tpu_custom_call.1} parent=1 // pred_fallthru
      _
    // Predicated region
    $region10: #{tpu_custom_call.1} parent=1 // pred_check
      _
    $region11: #{tpu_custom_call.1} parent=1 // pred_check_branch
      %24 = sbr.rel (0) target = $region13
    $region12: #{tpu_custom_call.1} parent=1 // pred_region
      _
    $region13: #{tpu_custom_call.1} parent=1 // pred_fallthru
      _
    // Predicated region
    $region14: #{tpu_custom_call.1} parent=1 // pred_check
      _
    $region15: #{tpu_custom_call.1} parent=1 // pred_check_branch
      %26 = sbr.rel (0) target = $region17
    $region16: #{tpu_custom_call.1} parent=1 // pred_region
      %28 = dma.done [#allocation4], 128
    $region17: #{tpu_custom_call.1} parent=1 // pred_fallthru
      _
    %v29 = vld [vmem:[#allocation3] sm:$0xff]
    %v30 = vld [vmem:[%s1] sm:$0x1]
    %v32 = vperm.slane %v30, 0
    %v34 = vmul.f32 %v29, %v32
    %vm35 = vcmask 261120
    %v36 = vsel %vm35, %v34, 0.0
    %37 = vadd.xlane.f32.xlu0 %v36
    %v38 = vpop.xlane.xlu0 %37
    %s39 = sld [smem:[#allocation2]]
    %v40 = vstv %s39
    %v41 = vadd.f32 %v38, %v40
    %v42 = vsub.f32 0.0, %v41
    %v43 = vmul.f32 %v42, 1.442695
    %v44 = vpow.pop %v43
    %v45 = vadd.f32 %v44, 1.0
    %v46 = vrcp.pop %v45
    %vm47 = vcmask 7168
    %48 = vst.msk [vmem:[%s3] sm:$0xff] %vm47, %v46
    // Predicated region
    $region18: #{tpu_custom_call.1} parent=1 // pred_check
      _
    $region19: #{tpu_custom_call.1} parent=1 // pred_check_branch
      %50 = sbr.rel (0) target = $region21
    $region20: #{tpu_custom_call.1} parent=1 // pred_region
      _
    $region21: #{tpu_custom_call.1} parent=1 // pred_fallthru
      _
    // Predicated region
    $region22: #{tpu_custom_call.1} parent=1 // pred_check
      _
    $region23: #{tpu_custom_call.1} parent=1 // pred_check_branch
      %52 = sbr.rel (0) target = $region25
    $region24: #{tpu_custom_call.1} parent=1 // pred_region
      _
    $region25: #{tpu_custom_call.1} parent=1 // pred_fallthru
      _
    %53 = vsyncpa [#allocation4], 1

</llo_original>
